<compile_context>
chip_gen: v7x
topology: tpu7x:2x2x1
jax: 0.10.0
libtpu: 0.0.40
codegen_flags: <defaults>
</compile_context>

<pallas_src>
import functools

import jax
import jax.numpy as jnp
from jax.experimental import pallas as pl
from jax.experimental.pallas import tpu as pltpu


LANE = 128        # lane width: last dims padded to this
VOCAB_PAD = 128   # padded vocab rows per embedding segment
SUBLANE = 8       # f32 sublane count: batch padded to a multiple of this


# ----------------------------- config (small, deterministic) -----------------------------
class Config:
    batch_size = 4
    attribute_size = 32       # A
    hidden_size = 32          # H
    num_layers = 2            # L  -> out features = H*L = 64
    num_attr = 3
    rating_size = 5
    category_size = 6
    tag_size = 20
    tag_maxlen = 8
    padding_idx = 0


# ----------------------------- Pallas kernel -----------------------------
def _encoder_kernel(ids_ref, param_ref, attr_ref, out_ref, *, num_cols, tag_pad_id):
    """ids_ref: (Bp, 2+T) int32, per-segment vocab offsets already added host-side:
         col 0 = rating (+0), col 1 = category (+128), cols 2.. = tag (+256).
       param_ref: (2*384 + 8, 128) f32 slab:
         rows   0:384  block-diagonal embedding table
         rows 384:768  fused Linear weight (table @ W, host-precomputed)
         row   768     bias
    """
    Bp = ids_ref.shape[0]
    K = 3 * VOCAB_PAD                        # 384 combined (offset) vocab columns
    f32 = jnp.float32

    ids = ids_ref[...]                                                    # (Bp, 2+T)
    vcol = jax.lax.broadcasted_iota(jnp.int32, (Bp, K), 1)                # (Bp, 384)

    # Fused selection matrix: one compare per id column (static unroll, 2+T columns).
    # Rating/category columns give exact one-hots; tag columns accumulate counts.
    m = jnp.zeros((Bp, K), f32)
    for c in range(num_cols):
        m = m + (vcol == ids[:, c:c + 1]).astype(f32)

    # tag_len = #tags != padding.  Rating/category ids are always < 256, so they never
    # equal tag_pad_id (= 256 + padding_idx): count all non-pad columns and subtract the
    # 2 rating/category columns.  Exact reciprocal (tiny vector; exactness is free).
    tag_len = jnp.sum((ids != tag_pad_id).astype(f32), axis=1, keepdims=True) - 2.0
    inv_len = 1.0 / tag_len                                               # (Bp, 1)

    # Scale only the tag segment so  onehot @ table  is the finished attr slab.
    onehot = m * jnp.where(vcol >= 2 * VOCAB_PAD, inv_len, jnp.float32(1.0))   # (Bp, 384)

    tbl = param_ref[0:K, :]                  # (384, 128) block-diagonal table
    w_f = param_ref[K:2 * K, :]              # (384, 128) fused Linear weight
    bias = param_ref[2 * K:2 * K + 1, :]     # (1, 128)

    # Two independent MXU matmuls on the same operand; single full-width stores.
    attr_ref[...] = jnp.dot(onehot, tbl, preferred_element_type=f32)
    out_ref[...] = jnp.tanh(jnp.dot(onehot, w_f, preferred_element_type=f32) + bias)


# ----------------------------- parameter packing (one-time) -----------------------------
def pack_params(params, cfg: Config):
    """One-time host-side packing: block-diagonal table, fused Linear weight, bias."""
    A = cfg.attribute_size
    out_feat = cfg.hidden_size * cfg.num_layers
    K = 3 * VOCAB_PAD

    tbl = jnp.zeros((K, LANE), jnp.float32)
    tbl = tbl.at[0:cfg.rating_size, 0:A].set(params["emb_rating"])
    tbl = tbl.at[VOCAB_PAD:VOCAB_PAD + cfg.category_size, A:2 * A].set(params["emb_category"])
    tbl = tbl.at[2 * VOCAB_PAD:2 * VOCAB_PAD + cfg.tag_size, 2 * A:3 * A].set(params["emb_tag"])

    w_pad = jnp.zeros((LANE, LANE), jnp.float32).at[:3 * A, :out_feat].set(params["out_w"])
    w_fused = tbl @ w_pad          # (K, 128);  onehot @ w_fused == attr @ W

    slab = jnp.zeros((2 * K + SUBLANE, LANE), jnp.float32)
    slab = slab.at[0:K, :].set(tbl)
    slab = slab.at[K:2 * K, :].set(w_fused)
    slab = slab.at[2 * K, :out_feat].set(params["out_b"])
    return slab


# ----------------------------- wrapper -----------------------------
def encoder_forward(param_slab, rating, category, tag, cfg: Config):
    """rating: (B,1) int, category: (B,1) int, tag: (B,T) int."""
    B, T = tag.shape
    A = cfg.attribute_size
    out_feat = cfg.hidden_size * cfg.num_layers
    Bp = ((B + SUBLANE - 1) // SUBLANE) * SUBLANE

    # Single int32 id slab with per-segment vocab offsets pre-added (1 input DMA).
    offs = jnp.concatenate([jnp.array([0, VOCAB_PAD], jnp.int32),
                            jnp.full((T,), 2 * VOCAB_PAD, jnp.int32)])
    ids = jnp.concatenate([rating, category, tag], axis=1).astype(jnp.int32) + offs[None, :]
    if Bp != B:
        # Padded rows use valid ids with tag != padding so tag_len > 0; cropped after.
        pad_row = (jnp.array([0, 0] + [1] * T, jnp.int32) + offs)[None, :]
        ids = jnp.concatenate([ids, jnp.tile(pad_row, (Bp - B, 1))], axis=0)

    vmem = pl.BlockSpec(memory_space=pltpu.MemorySpace.VMEM)
    kernel = functools.partial(_encoder_kernel, num_cols=2 + T,
                               tag_pad_id=2 * VOCAB_PAD + cfg.padding_idx)
    attr_pad, out_pad = pl.pallas_call(
        kernel,
        out_shape=(
            jax.ShapeDtypeStruct((Bp, LANE), jnp.float32),
            jax.ShapeDtypeStruct((Bp, LANE), jnp.float32),
        ),
        in_specs=[vmem, vmem],
        out_specs=(vmem, vmem),
    )(ids, param_slab)

    # crop lane/batch padding, then view like the PyTorch reference
    attr = attr_pad[:B, :3 * A].reshape(B, cfg.num_attr, -1)             # (B, 3, A)
    encoder_output = out_pad[:B, :out_feat].reshape(B, 1, out_feat)      # (B, 1, H*L)
    return attr, encoder_output


# ----------------------------- deterministic parameter init -----------------------------
def init_params(cfg: Config, key):
    ks = jax.random.split(key, 4)
    u = lambda k, shape: jax.random.uniform(k, shape, jnp.float32, -0.08, 0.08)
    return {
        "emb_rating": u(ks[0], (cfg.rating_size, cfg.attribute_size)),
        "emb_category": u(ks[1], (cfg.category_size, cfg.attribute_size)),
        "emb_tag": u(ks[2], (cfg.tag_size, cfg.attribute_size)),
        # nn.Linear weight is (out, in); store transposed (in, out) for x @ W
        "out_w": u(ks[3], (cfg.attribute_size * 3, cfg.hidden_size * cfg.num_layers)),
        "out_b": u(jax.random.fold_in(ks[3], 1), (cfg.hidden_size * cfg.num_layers,)),
    }


# ----------------------------- pure-JAX reference (for verification) -----------------------------
def encoder_reference(params, rating, category, tag, cfg: Config):
    er = params["emb_rating"][rating[:, 0]][:, None, :]        # (B,1,A)
    ec = params["emb_category"][category[:, 0]][:, None, :]
    et = params["emb_tag"][tag]                                # (B,T,A)
    tag_len = jnp.sum(tag != cfg.padding_idx, axis=1).astype(jnp.float32)[:, None, None]
    attr_tag = jnp.sum(et, axis=1, keepdims=True) / tag_len
    attr = jnp.concatenate([er, ec, attr_tag], axis=2)         # (B,1,3A)
    out = attr @ params["out_w"] + params["out_b"]
    return attr.reshape(cfg.batch_size, cfg.num_attr, -1), jnp.tanh(out)


# ----------------------------- main -----------------------------
if __name__ == "__main__":
    cfg = Config()
    key = jax.random.PRNGKey(0)
    pkey, k_r, k_c, k_t = jax.random.split(key, 4)

    params = init_params(cfg, pkey)
    param_slab = pack_params(params, cfg)   # one-time, amortized in real use

    rating = jax.random.randint(k_r, (cfg.batch_size, 1), 0, cfg.rating_size, jnp.int32)
    category = jax.random.randint(k_c, (cfg.batch_size, 1), 0, cfg.category_size, jnp.int32)
    # ensure at least one non-padding token per row so tag_len > 0 (matches valid inputs)
    tag = jax.random.randint(k_t, (cfg.batch_size, cfg.tag_maxlen), 0, cfg.tag_size, jnp.int32)
    tag = tag.at[:, 0].set(jnp.maximum(tag[:, 0], 1))

    fwd = jax.jit(lambda pp, r, c, t: encoder_forward(pp, r, c, t, cfg))
    attr, enc_out = fwd(param_slab, rating, category, tag)
    jax.block_until_ready((attr, enc_out))

    # sanity check against pure-JAX reference (exact reciprocal now; tolerance covers
    # matmul accumulation-order differences only)
    attr_ref, enc_ref = encoder_reference(params, rating, category, tag, cfg)
    assert attr.shape == (cfg.batch_size, cfg.num_attr, cfg.attribute_size)
    assert enc_out.shape == (cfg.batch_size, 1, cfg.hidden_size * cfg.num_layers)
    assert jnp.allclose(attr, attr_ref, atol=1e-3), float(jnp.max(jnp.abs(attr - attr_ref)))
    assert jnp.allclose(enc_out, enc_ref, atol=1e-3), float(jnp.max(jnp.abs(enc_out - enc_ref)))

    print("KERNEL_OK")
</pallas_src>

<mosaic_0001>
module attributes {stable_mosaic.version = 11 : i64} {
  func.func @_encoder_kernel(%arg0: memref<8x10xi32, #tpu.memory_space<vmem>>, %arg1: memref<776x128xf32, #tpu.memory_space<vmem>>, %arg2: memref<8x128xf32, #tpu.memory_space<vmem>>, %arg3: memref<8x128xf32, #tpu.memory_space<vmem>>) attributes {dimension_semantics = [], scalar_prefetch = 0 : i64, scratch_operands = 0 : i64, tpu.core_type = #tpu.core_type<tc>} {
    %c0 = arith.constant 0 : index
    %c0_0 = arith.constant 0 : index
    %0 = vector.load %arg0[%c0, %c0_0] : memref<8x10xi32, #tpu.memory_space<vmem>>, vector<8x10xi32>
    %1 = tpu.iota {dimensions = array<i32: 1>} : vector<8x384xi32>
    %cst = arith.constant 0.000000e+00 : f32
    %2 = vector.broadcast %cst : f32 to vector<8x384xf32>
    %3 = vector.extract_strided_slice %0 {offsets = [0, 0], sizes = [8, 1], strides = [1, 1]} : vector<8x10xi32> to vector<8x1xi32>
    %4 = vector.broadcast %3 : vector<8x1xi32> to vector<8x384xi32>
    %5 = arith.cmpi eq, %1, %4 : vector<8x384xi32>
    %6 = arith.extui %5 : vector<8x384xi1> to vector<8x384xi32>
    %7 = arith.sitofp %6 : vector<8x384xi32> to vector<8x384xf32>
    %8 = arith.addf %2, %7 : vector<8x384xf32>
    %9 = vector.extract_strided_slice %0 {offsets = [0, 1], sizes = [8, 1], strides = [1, 1]} : vector<8x10xi32> to vector<8x1xi32>
    %10 = vector.broadcast %9 : vector<8x1xi32> to vector<8x384xi32>
    %11 = arith.cmpi eq, %1, %10 : vector<8x384xi32>
    %12 = arith.extui %11 : vector<8x384xi1> to vector<8x384xi32>
    %13 = arith.sitofp %12 : vector<8x384xi32> to vector<8x384xf32>
    %14 = arith.addf %8, %13 : vector<8x384xf32>
    %15 = vector.extract_strided_slice %0 {offsets = [0, 2], sizes = [8, 1], strides = [1, 1]} : vector<8x10xi32> to vector<8x1xi32>
    %16 = vector.broadcast %15 : vector<8x1xi32> to vector<8x384xi32>
    %17 = arith.cmpi eq, %1, %16 : vector<8x384xi32>
    %18 = arith.extui %17 : vector<8x384xi1> to vector<8x384xi32>
    %19 = arith.sitofp %18 : vector<8x384xi32> to vector<8x384xf32>
    %20 = arith.addf %14, %19 : vector<8x384xf32>
    %21 = vector.extract_strided_slice %0 {offsets = [0, 3], sizes = [8, 1], strides = [1, 1]} : vector<8x10xi32> to vector<8x1xi32>
    %22 = vector.broadcast %21 : vector<8x1xi32> to vector<8x384xi32>
    %23 = arith.cmpi eq, %1, %22 : vector<8x384xi32>
    %24 = arith.extui %23 : vector<8x384xi1> to vector<8x384xi32>
    %25 = arith.sitofp %24 : vector<8x384xi32> to vector<8x384xf32>
    %26 = arith.addf %20, %25 : vector<8x384xf32>
    %27 = vector.extract_strided_slice %0 {offsets = [0, 4], sizes = [8, 1], strides = [1, 1]} : vector<8x10xi32> to vector<8x1xi32>
    %28 = vector.broadcast %27 : vector<8x1xi32> to vector<8x384xi32>
    %29 = arith.cmpi eq, %1, %28 : vector<8x384xi32>
    %30 = arith.extui %29 : vector<8x384xi1> to vector<8x384xi32>
    %31 = arith.sitofp %30 : vector<8x384xi32> to vector<8x384xf32>
    %32 = arith.addf %26, %31 : vector<8x384xf32>
    %33 = vector.extract_strided_slice %0 {offsets = [0, 5], sizes = [8, 1], strides = [1, 1]} : vector<8x10xi32> to vector<8x1xi32>
    %34 = vector.broadcast %33 : vector<8x1xi32> to vector<8x384xi32>
    %35 = arith.cmpi eq, %1, %34 : vector<8x384xi32>
    %36 = arith.extui %35 : vector<8x384xi1> to vector<8x384xi32>
    %37 = arith.sitofp %36 : vector<8x384xi32> to vector<8x384xf32>
    %38 = arith.addf %32, %37 : vector<8x384xf32>
    %39 = vector.extract_strided_slice %0 {offsets = [0, 6], sizes = [8, 1], strides = [1, 1]} : vector<8x10xi32> to vector<8x1xi32>
    %40 = vector.broadcast %39 : vector<8x1xi32> to vector<8x384xi32>
    %41 = arith.cmpi eq, %1, %40 : vector<8x384xi32>
    %42 = arith.extui %41 : vector<8x384xi1> to vector<8x384xi32>
    %43 = arith.sitofp %42 : vector<8x384xi32> to vector<8x384xf32>
    %44 = arith.addf %38, %43 : vector<8x384xf32>
    %45 = vector.extract_strided_slice %0 {offsets = [0, 7], sizes = [8, 1], strides = [1, 1]} : vector<8x10xi32> to vector<8x1xi32>
    %46 = vector.broadcast %45 : vector<8x1xi32> to vector<8x384xi32>
    %47 = arith.cmpi eq, %1, %46 : vector<8x384xi32>
    %48 = arith.extui %47 : vector<8x384xi1> to vector<8x384xi32>
    %49 = arith.sitofp %48 : vector<8x384xi32> to vector<8x384xf32>
    %50 = arith.addf %44, %49 : vector<8x384xf32>
    %51 = vector.extract_strided_slice %0 {offsets = [0, 8], sizes = [8, 1], strides = [1, 1]} : vector<8x10xi32> to vector<8x1xi32>
    %52 = vector.broadcast %51 : vector<8x1xi32> to vector<8x384xi32>
    %53 = arith.cmpi eq, %1, %52 : vector<8x384xi32>
    %54 = arith.extui %53 : vector<8x384xi1> to vector<8x384xi32>
    %55 = arith.sitofp %54 : vector<8x384xi32> to vector<8x384xf32>
    %56 = arith.addf %50, %55 : vector<8x384xf32>
    %57 = vector.extract_strided_slice %0 {offsets = [0, 9], sizes = [8, 1], strides = [1, 1]} : vector<8x10xi32> to vector<8x1xi32>
    %58 = vector.broadcast %57 : vector<8x1xi32> to vector<8x384xi32>
    %59 = arith.cmpi eq, %1, %58 : vector<8x384xi32>
    %60 = arith.extui %59 : vector<8x384xi1> to vector<8x384xi32>
    %61 = arith.sitofp %60 : vector<8x384xi32> to vector<8x384xf32>
    %62 = arith.addf %56, %61 : vector<8x384xf32>
    %c256_i32 = arith.constant 256 : i32
    %63 = vector.broadcast %c256_i32 : i32 to vector<8x10xi32>
    %64 = arith.cmpi ne, %0, %63 : vector<8x10xi32>
    %65 = arith.extui %64 : vector<8x10xi1> to vector<8x10xi32>
    %66 = arith.sitofp %65 : vector<8x10xi32> to vector<8x10xf32>
    %cst_1 = arith.constant dense<0.000000e+00> : vector<8xf32>
    %67 = vector.multi_reduction <add>, %66, %cst_1 [1] : vector<8x10xf32> to vector<8xf32>
    %68 = vector.shape_cast %67 : vector<8xf32> to vector<8x1xf32>
    %cst_2 = arith.constant 2.000000e+00 : f32
    %69 = vector.broadcast %cst_2 : f32 to vector<8x1xf32>
    %70 = arith.subf %68, %69 : vector<8x1xf32>
    %cst_3 = arith.constant 1.000000e+00 : f32
    %71 = vector.broadcast %cst_3 : f32 to vector<8x1xf32>
    %72 = arith.divf %71, %70 : vector<8x1xf32>
    %c256_i32_4 = arith.constant 256 : i32
    %73 = vector.broadcast %c256_i32_4 : i32 to vector<8x384xi32>
    %74 = arith.cmpi sge, %1, %73 : vector<8x384xi32>
    %cst_5 = arith.constant 1.000000e+00 : f32
    %75 = vector.shape_cast %72 : vector<8x1xf32> to vector<8x1xf32>
    %76 = vector.broadcast %75 : vector<8x1xf32> to vector<8x384xf32>
    %77 = vector.broadcast %cst_5 : f32 to vector<8x384xf32>
    %78 = arith.select %74, %76, %77 : vector<8x384xi1>, vector<8x384xf32>
    %79 = arith.mulf %62, %78 : vector<8x384xf32>
    %c0_6 = arith.constant 0 : index
    %c0_7 = arith.constant 0 : index
    %80 = vector.load %arg1[%c0_6, %c0_7] : memref<776x128xf32, #tpu.memory_space<vmem>>, vector<384x128xf32>
    %c384 = arith.constant 384 : index
    %c0_8 = arith.constant 0 : index
    %81 = vector.load %arg1[%c384, %c0_8] : memref<776x128xf32, #tpu.memory_space<vmem>>, vector<384x128xf32>
    %c768 = arith.constant 768 : index
    %c0_9 = arith.constant 0 : index
    %82 = vector.load %arg1[%c768, %c0_9] : memref<776x128xf32, #tpu.memory_space<vmem>>, vector<1x128xf32>
    %cst_10 = arith.constant dense<0.000000e+00> : vector<8x128xf32>
    %83 = tpu.matmul %79, %80, %cst_10 {dimension_numbers = #tpu.dot_dimension_numbers<[1], [0], [0], [1], [0, 0, 1, 1], [], []>} : vector<8x384xf32>, vector<384x128xf32>, vector<8x128xf32> -> vector<8x128xf32>
    %c0_11 = arith.constant 0 : index
    %c0_12 = arith.constant 0 : index
    %84 = vector.load %arg2[%c0_11, %c0_12] : memref<8x128xf32, #tpu.memory_space<vmem>>, vector<8x128xf32>
    tpu.vector_store %arg2[%c0_11, %c0_12], %83 {strides = array<i32>} : memref<8x128xf32, #tpu.memory_space<vmem>>, vector<8x128xf32>,
    %cst_13 = arith.constant dense<0.000000e+00> : vector<8x128xf32>
    %85 = tpu.matmul %79, %81, %cst_13 {dimension_numbers = #tpu.dot_dimension_numbers<[1], [0], [0], [1], [0, 0, 1, 1], [], []>} : vector<8x384xf32>, vector<384x128xf32>, vector<8x128xf32> -> vector<8x128xf32>
    %86 = vector.broadcast %82 : vector<1x128xf32> to vector<8x128xf32>
    %87 = arith.addf %85, %86 : vector<8x128xf32>
    %88 = math.tanh %87 : vector<8x128xf32>
    %c0_14 = arith.constant 0 : index
    %c0_15 = arith.constant 0 : index
    %89 = vector.load %arg3[%c0_14, %c0_15] : memref<8x128xf32, #tpu.memory_space<vmem>>, vector<8x128xf32>
    tpu.vector_store %arg3[%c0_14, %c0_15], %88 {strides = array<i32>} : memref<8x128xf32, #tpu.memory_space<vmem>>, vector<8x128xf32>,
    return
  }
}

</mosaic_0001>

<llo_original>
// kernel: _lambda_.1
$region0: #{_lambda_.1}
  #allocation0 [shape = 'u32[]', space=smem, size = 0x4, offset = 0x4, fixed_abs, tag = 'smem constant byte address 0x4 - core index']
  #allocation1 [shape = 'u32[144,128]{1,0:T(1,128)}', space=vmem, size = 0x12000, scoped, tag = 'internal scratch']
  %s0 = inlined_call_operand.vmem [shape: s32[8,10], index: 0, kind: input, shape index: {}]
  %s1 = inlined_call_operand.hbm [shape: f32[776,128], index: 1, kind: input, shape index: {}]
  %s2 = inlined_call_operand.vmem [shape: f32[8,128], index: 2, kind: output, shape index: {0}]
  %s3 = inlined_call_operand.vmem [shape: f32[8,128], index: 3, kind: output, shape index: {1}]
  %4 = xla_tuple %s2, %s3
  %s5 = sld [smem:[#allocation0]]
  $region30: #{_lambda_.1} parent=0
    _
  %s7 = ssub.s32 1, %s5
  %s8 = scalar_select 0, %s7, %s5
  $region1: #{_lambda_.1} parent=0
    #allocation2 [shape = 'u8[397312]{0}', space=vmem, size = 0x61000, scoped, tag = 'input window, operand 1, single buffered']
    #allocation3 [shape = 's32[1]{0}', space=sflag, size = 0x4, scoped, tag = 'scoped memory for _lambda_.1']
    %9 = vsyncpa [#allocation3], 0
    // Predicated region
    $region2: #{_lambda_.1} parent=1 // pred_check
      _
    $region3: #{_lambda_.1} parent=1 // pred_check_branch
      %11 = sbr.rel (0) target = $region5
    $region4: #{_lambda_.1} parent=1 // pred_region
      _
    $region5: #{_lambda_.1} parent=1 // pred_fallthru
      _
    // Predicated region
    $region6: #{_lambda_.1} parent=1 // pred_check
      _
    $region7: #{_lambda_.1} parent=1 // pred_check_branch
      %13 = sbr.rel (0) target = $region9
    $region8: #{_lambda_.1} parent=1 // pred_region
      %s15 = ssub.s32 12416, 12416
      %16 = vsyncadd [#allocation3], %s15
      %s17 = sshll.u32 [#allocation2], 4
      %s18 = int_to_ptr.vmem [resolvable:$true] %s17
      %23 = dma.hbm_to_vmem [thread:$0]  %s1, 12416, %s18, [#allocation3], 128, 128, 8
    $region9: #{_lambda_.1} parent=1 // pred_fallthru
      _
    // Predicated region
    $region10: #{_lambda_.1} parent=1 // pred_check
      _
    $region11: #{_lambda_.1} parent=1 // pred_check_branch
      %25 = sbr.rel (0) target = $region13
    $region12: #{_lambda_.1} parent=1 // pred_region
      %26 = dma.done [#allocation3], 12416
    $region13: #{_lambda_.1} parent=1 // pred_fallthru
      _
    %v27 = vld [vmem:[%s0] sm:$0xff]
    %v28 = vlaneseq
    %v29 = vand.u32 %v28, 127
    %v30 = vadd.s32 %v29, 128
    %v31 = vadd.s32 %v29, 256
    %32 = vset.pattern.permute.xlu0 0
    %33 = vperm.xlu0 %32, %v27
    %v34 = vpop.permute.xlu0 %33
    %vm35 = vcmp.eq.s32.totalorder %v29, %v34
    %vm36 = vcmp.eq.s32.totalorder %v30, %v34
    %vm37 = vcmp.eq.s32.totalorder %v31, %v34
    %v38 = vsel %vm35, 1, 0
    %v39 = vsel %vm36, 1, 0
    %v40 = vsel %vm37, 1, 0
    %v41 = vcvt.s32.f32 %v38
    %v42 = vcvt.s32.f32 %v39
    %v43 = vcvt.s32.f32 %v40
    %v44 = vadd.f32 %v41, 0.0
    %v45 = vadd.f32 %v42, 0.0
    %v46 = vadd.f32 %v43, 0.0
    %47 = vset.pattern.permute.xlu0 1
    %48 = vperm.xlu0 %47, %v27
    %v49 = vpop.permute.xlu0 %48
    %vm50 = vcmp.eq.s32.totalorder %v29, %v49
    %vm51 = vcmp.eq.s32.totalorder %v30, %v49
    %vm52 = vcmp.eq.s32.totalorder %v31, %v49
    %v53 = vsel %vm50, 1, 0
    %v54 = vsel %vm51, 1, 0
    %v55 = vsel %vm52, 1, 0
    %v56 = vcvt.s32.f32 %v53
    %v57 = vcvt.s32.f32 %v54
    %v58 = vcvt.s32.f32 %v55
    %v59 = vadd.f32 %v44, %v56
    %v60 = vadd.f32 %v45, %v57
    %v61 = vadd.f32 %v46, %v58
    %62 = vset.pattern.permute.xlu0 2
    %63 = vperm.xlu0 %62, %v27
    %v64 = vpop.permute.xlu0 %63
    %vm65 = vcmp.eq.s32.totalorder %v29, %v64
    %vm66 = vcmp.eq.s32.totalorder %v30, %v64
    %vm67 = vcmp.eq.s32.totalorder %v31, %v64
    %v68 = vsel %vm65, 1, 0
    %v69 = vsel %vm66, 1, 0
    %v70 = vsel %vm67, 1, 0
    %v71 = vcvt.s32.f32 %v68
    %v72 = vcvt.s32.f32 %v69
    %v73 = vcvt.s32.f32 %v70
    %v74 = vadd.f32 %v59, %v71
    %v75 = vadd.f32 %v60, %v72
    %v76 = vadd.f32 %v61, %v73
    %77 = vset.pattern.permute.xlu0 3
    %78 = vperm.xlu0 %77, %v27
    %v79 = vpop.permute.xlu0 %78
    %vm80 = vcmp.eq.s32.totalorder %v29, %v79
    %vm81 = vcmp.eq.s32.totalorder %v30, %v79
    %vm82 = vcmp.eq.s32.totalorder %v31, %v79
    %v83 = vsel %vm80, 1, 0
    %v84 = vsel %vm81, 1, 0
    %v85 = vsel %vm82, 1, 0
    %v86 = vcvt.s32.f32 %v83
    %v87 = vcvt.s32.f32 %v84
    %v88 = vcvt.s32.f32 %v85
    %v89 = vadd.f32 %v74, %v86
    %v90 = vadd.f32 %v75, %v87
    %v91 = vadd.f32 %v76, %v88
    %92 = vset.pattern.permute.xlu0 4
    %93 = vperm.xlu0 %92, %v27
    %v94 = vpop.permute.xlu0 %93
    %vm95 = vcmp.eq.s32.totalorder %v29, %v94
    %vm96 = vcmp.eq.s32.totalorder %v30, %v94
    %vm97 = vcmp.eq.s32.totalorder %v31, %v94
    %v98 = vsel %vm95, 1, 0
    %v99 = vsel %vm96, 1, 0
    %v100 = vsel %vm97, 1, 0
    %v101 = vcvt.s32.f32 %v98
    %v102 = vcvt.s32.f32 %v99
    %v103 = vcvt.s32.f32 %v100
    %v104 = vadd.f32 %v89, %v101
    %v105 = vadd.f32 %v90, %v102
    %v106 = vadd.f32 %v91, %v103
    %107 = vset.pattern.permute.xlu0 5
    %108 = vperm.xlu0 %107, %v27
    %v109 = vpop.permute.xlu0 %108
    %vm110 = vcmp.eq.s32.totalorder %v29, %v109
    %vm111 = vcmp.eq.s32.totalorder %v30, %v109
    %vm112 = vcmp.eq.s32.totalorder %v31, %v109
    %v113 = vsel %vm110, 1, 0
    %v114 = vsel %vm111, 1, 0
    %v115 = vsel %vm112, 1, 0
    %v116 = vcvt.s32.f32 %v113
    %v117 = vcvt.s32.f32 %v114
    %v118 = vcvt.s32.f32 %v115
    %v119 = vadd.f32 %v104, %v116
    %v120 = vadd.f32 %v105, %v117
    %v121 = vadd.f32 %v106, %v118
    %122 = vset.pattern.permute.xlu0 6
    %123 = vperm.xlu0 %122, %v27
    %v124 = vpop.permute.xlu0 %123
    %vm125 = vcmp.eq.s32.totalorder %v29, %v124
    %vm126 = vcmp.eq.s32.totalorder %v30, %v124
    %vm127 = vcmp.eq.s32.totalorder %v31, %v124
    %v128 = vsel %vm125, 1, 0
    %v129 = vsel %vm126, 1, 0
    %v130 = vsel %vm127, 1, 0
    %v131 = vcvt.s32.f32 %v128
    %v132 = vcvt.s32.f32 %v129
    %v133 = vcvt.s32.f32 %v130
    %v134 = vadd.f32 %v119, %v131
    %v135 = vadd.f32 %v120, %v132
    %v136 = vadd.f32 %v121, %v133
    %137 = vset.pattern.permute.xlu0 7
    %138 = vperm.xlu0 %137, %v27
    %v139 = vpop.permute.xlu0 %138
    %vm140 = vcmp.eq.s32.totalorder %v29, %v139
    %vm141 = vcmp.eq.s32.totalorder %v30, %v139
    %vm142 = vcmp.eq.s32.totalorder %v31, %v139
    %v143 = vsel %vm140, 1, 0
    %v144 = vsel %vm141, 1, 0
    %v145 = vsel %vm142, 1, 0
    %v146 = vcvt.s32.f32 %v143
    %v147 = vcvt.s32.f32 %v144
    %v148 = vcvt.s32.f32 %v145
    %v149 = vadd.f32 %v134, %v146
    %v150 = vadd.f32 %v135, %v147
    %v151 = vadd.f32 %v136, %v148
    %152 = vset.pattern.permute.xlu0 8
    %153 = vperm.xlu0 %152, %v27
    %v154 = vpop.permute.xlu0 %153
    %vm155 = vcmp.eq.s32.totalorder %v29, %v154
    %vm156 = vcmp.eq.s32.totalorder %v30, %v154
    %vm157 = vcmp.eq.s32.totalorder %v31, %v154
    %v158 = vsel %vm155, 1, 0
    %v159 = vsel %vm156, 1, 0
    %v160 = vsel %vm157, 1, 0
    %v161 = vcvt.s32.f32 %v158
    %v162 = vcvt.s32.f32 %v159
    %v163 = vcvt.s32.f32 %v160
    %v164 = vadd.f32 %v149, %v161
    %v165 = vadd.f32 %v150, %v162
    %v166 = vadd.f32 %v151, %v163
    %167 = vset.pattern.permute.xlu0 9
    %168 = vperm.xlu0 %167, %v27
    %v169 = vpop.permute.xlu0 %168
    %vm170 = vcmp.eq.s32.totalorder %v29, %v169
    %vm171 = vcmp.eq.s32.totalorder %v30, %v169
    %vm172 = vcmp.eq.s32.totalorder %v31, %v169
    %v173 = vsel %vm170, 1, 0
    %v174 = vsel %vm171, 1, 0
    %v175 = vsel %vm172, 1, 0
    %v176 = vcvt.s32.f32 %v173
    %v177 = vcvt.s32.f32 %v174
    %v178 = vcvt.s32.f32 %v175
    %v179 = vadd.f32 %v164, %v176
    %v180 = vadd.f32 %v165, %v177
    %v181 = vadd.f32 %v166, %v178
    %vm182 = vcmp.ne.s32.totalorder %v27, 256
    %v183 = vsel %vm182, 1, 0
    %v184 = vcvt.s32.f32 %v183
    %vm185 = vcmask 80896
    %v186 = vsel %vm185, %v184, 0.0
    %187 = vadd.xlane.f32.xlu0 %v186
    %v188 = vpop.xlane.xlu0 %187
    %v189 = vsub.f32 %v188, 2.0
    %v190 = vrcp.pop %v189
    %v191 = vmul.f32 1.0, %v190
    %vm192 = vcmp.ge.s32.totalorder %v29, 256
    %vm193 = vcmp.ge.s32.totalorder %v30, 256
    %vm194 = vcmp.ge.s32.totalorder %v31, 256
    %v195 = vsel %vm192, %v191, 1.0
    %v196 = vsel %vm193, %v191, 1.0
    %v197 = vsel %vm194, %v191, 1.0
    %v198 = vmul.f32 %v179, %v195
    %v199 = vmul.f32 %v180, %v196
    %v200 = vmul.f32 %v181, %v197
    %v201 = vld [vmem:[#allocation2] sm:$0xff]
    %v202 = vld [vmem:[#allocation2 + $0x8] sm:$0xff]
    %v203 = vld [vmem:[#allocation2 + $0x10] sm:$0xff]
    %v204 = vld [vmem:[#allocation2 + $0x18] sm:$0xff]
    %v205 = vld [vmem:[#allocation2 + $0x20] sm:$0xff]
    %v206 = vld [vmem:[#allocation2 + $0x28] sm:$0xff]
    %v207 = vld [vmem:[#allocation2 + $0x30] sm:$0xff]
    %v208 = vld [vmem:[#allocation2 + $0x38] sm:$0xff]
    %v209 = vld [vmem:[#allocation2 + $0x40] sm:$0xff]
    %v210 = vld [vmem:[#allocation2 + $0x48] sm:$0xff]
    %v211 = vld [vmem:[#allocation2 + $0x50] sm:$0xff]
    %v212 = vld [vmem:[#allocation2 + $0x58] sm:$0xff]
    %v213 = vld [vmem:[#allocation2 + $0x60] sm:$0xff]
    %v214 = vld [vmem:[#allocation2 + $0x68] sm:$0xff]
    %v215 = vld [vmem:[#allocation2 + $0x70] sm:$0xff]
    %v216 = vld [vmem:[#allocation2 + $0x78] sm:$0xff]
    %v217 = vld [vmem:[#allocation2 + $0x80] sm:$0xff]
    %v218 = vld [vmem:[#allocation2 + $0x88] sm:$0xff]
    %v219 = vld [vmem:[#allocation2 + $0x90] sm:$0xff]
    %v220 = vld [vmem:[#allocation2 + $0x98] sm:$0xff]
    %v221 = vld [vmem:[#allocation2 + $0xa0] sm:$0xff]
    %v222 = vld [vmem:[#allocation2 + $0xa8] sm:$0xff]
    %v223 = vld [vmem:[#allocation2 + $0xb0] sm:$0xff]
    %v224 = vld [vmem:[#allocation2 + $0xb8] sm:$0xff]
    %v225 = vld [vmem:[#allocation2 + $0xc0] sm:$0xff]
    %v226 = vld [vmem:[#allocation2 + $0xc8] sm:$0xff]
    %v227 = vld [vmem:[#allocation2 + $0xd0] sm:$0xff]
    %v228 = vld [vmem:[#allocation2 + $0xd8] sm:$0xff]
    %v229 = vld [vmem:[#allocation2 + $0xe0] sm:$0xff]
    %v230 = vld [vmem:[#allocation2 + $0xe8] sm:$0xff]
    %v231 = vld [vmem:[#allocation2 + $0xf0] sm:$0xff]
    %v232 = vld [vmem:[#allocation2 + $0xf8] sm:$0xff]
    %v233 = vld [vmem:[#allocation2 + $0x100] sm:$0xff]
    %v234 = vld [vmem:[#allocation2 + $0x108] sm:$0xff]
    %v235 = vld [vmem:[#allocation2 + $0x110] sm:$0xff]
    %v236 = vld [vmem:[#allocation2 + $0x118] sm:$0xff]
    %v237 = vld [vmem:[#allocation2 + $0x120] sm:$0xff]
    %v238 = vld [vmem:[#allocation2 + $0x128] sm:$0xff]
    %v239 = vld [vmem:[#allocation2 + $0x130] sm:$0xff]
    %v240 = vld [vmem:[#allocation2 + $0x138] sm:$0xff]
    %v241 = vld [vmem:[#allocation2 + $0x140] sm:$0xff]
    %v242 = vld [vmem:[#allocation2 + $0x148] sm:$0xff]
    %v243 = vld [vmem:[#allocation2 + $0x150] sm:$0xff]
    %v244 = vld [vmem:[#allocation2 + $0x158] sm:$0xff]
    %v245 = vld [vmem:[#allocation2 + $0x160] sm:$0xff]
    %v246 = vld [vmem:[#allocation2 + $0x168] sm:$0xff]
    %v247 = vld [vmem:[#allocation2 + $0x170] sm:$0xff]
    %v248 = vld [vmem:[#allocation2 + $0x178] sm:$0xff]
    %v249 = vld [vmem:[#allocation2 + $0x180] sm:$0xff]
    %v250 = vld [vmem:[#allocation2 + $0x188] sm:$0xff]
    %v251 = vld [vmem:[#allocation2 + $0x190] sm:$0xff]
    %v252 = vld [vmem:[#allocation2 + $0x198] sm:$0xff]
    %v253 = vld [vmem:[#allocation2 + $0x1a0] sm:$0xff]
    %v254 = vld [vmem:[#allocation2 + $0x1a8] sm:$0xff]
    %v255 = vld [vmem:[#allocation2 + $0x1b0] sm:$0xff]
    %v256 = vld [vmem:[#allocation2 + $0x1b8] sm:$0xff]
    %v257 = vld [vmem:[#allocation2 + $0x1c0] sm:$0xff]
    %v258 = vld [vmem:[#allocation2 + $0x1c8] sm:$0xff]
    %v259 = vld [vmem:[#allocation2 + $0x1d0] sm:$0xff]
    %v260 = vld [vmem:[#allocation2 + $0x1d8] sm:$0xff]
    %v261 = vld [vmem:[#allocation2 + $0x1e0] sm:$0xff]
    %v262 = vld [vmem:[#allocation2 + $0x1e8] sm:$0xff]
    %v263 = vld [vmem:[#allocation2 + $0x1f0] sm:$0xff]
    %v264 = vld [vmem:[#allocation2 + $0x1f8] sm:$0xff]
    %v265 = vld [vmem:[#allocation2 + $0x200] sm:$0xff]
    %v266 = vld [vmem:[#allocation2 + $0x208] sm:$0xff]
    %v267 = vld [vmem:[#allocation2 + $0x210] sm:$0xff]
    %v268 = vld [vmem:[#allocation2 + $0x218] sm:$0xff]
    %v269 = vld [vmem:[#allocation2 + $0x220] sm:$0xff]
    %v270 = vld [vmem:[#allocation2 + $0x228] sm:$0xff]
    %v271 = vld [vmem:[#allocation2 + $0x230] sm:$0xff]
    %v272 = vld [vmem:[#allocation2 + $0x238] sm:$0xff]
    %v273 = vld [vmem:[#allocation2 + $0x240] sm:$0xff]
    %v274 = vld [vmem:[#allocation2 + $0x248] sm:$0xff]
    %v275 = vld [vmem:[#allocation2 + $0x250] sm:$0xff]
    %v276 = vld [vmem:[#allocation2 + $0x258] sm:$0xff]
    %v277 = vld [vmem:[#allocation2 + $0x260] sm:$0xff]
    %v278 = vld [vmem:[#allocation2 + $0x268] sm:$0xff]
    %v279 = vld [vmem:[#allocation2 + $0x270] sm:$0xff]
    %v280 = vld [vmem:[#allocation2 + $0x278] sm:$0xff]
    %v281 = vld [vmem:[#allocation2 + $0x280] sm:$0xff]
    %v282 = vld [vmem:[#allocation2 + $0x288] sm:$0xff]
    %v283 = vld [vmem:[#allocation2 + $0x290] sm:$0xff]
    %v284 = vld [vmem:[#allocation2 + $0x298] sm:$0xff]
    %v285 = vld [vmem:[#allocation2 + $0x2a0] sm:$0xff]
    %v286 = vld [vmem:[#allocation2 + $0x2a8] sm:$0xff]
    %v287 = vld [vmem:[#allocation2 + $0x2b0] sm:$0xff]
    %v288 = vld [vmem:[#allocation2 + $0x2b8] sm:$0xff]
    %v289 = vld [vmem:[#allocation2 + $0x2c0] sm:$0xff]
    %v290 = vld [vmem:[#allocation2 + $0x2c8] sm:$0xff]
    %v291 = vld [vmem:[#allocation2 + $0x2d0] sm:$0xff]
    %v292 = vld [vmem:[#allocation2 + $0x2d8] sm:$0xff]
    %v293 = vld [vmem:[#allocation2 + $0x2e0] sm:$0xff]
    %v294 = vld [vmem:[#allocation2 + $0x2e8] sm:$0xff]
    %v295 = vld [vmem:[#allocation2 + $0x2f0] sm:$0xff]
    %v296 = vld [vmem:[#allocation2 + $0x2f8] sm:$0xff]
    %v297 = vld [vmem:[#allocation2 + $0x300] sm:$0x1]
    %298 = vmatprep.subr.mxu0 0.0
    %299 = vmatpush1.msra.mxu0 %v201
    %300 = vmatprep.subr.mxu0 0.0
    %301 = vmatpush1.msra.mxu0 %v202
    %302 = vmatprep.subr.mxu0 0.0
    %303 = vmatpush1.msra.mxu0 %v203
    %304 = vmatprep.subr.mxu0 0.0
    %305 = vmatpush1.msra.mxu0 %v204
    %306 = vmatprep.subr.mxu0 0.0
    %307 = vmatpush1.msra.mxu0 %v205
    %308 = vmatprep.subr.mxu0 0.0
    %309 = vmatpush1.msra.mxu0 %v206
    %310 = vmatprep.subr.mxu0 0.0
    %311 = vmatpush1.msra.mxu0 %v207
    %312 = vmatprep.subr.mxu0 0.0
    %313 = vmatpush1.msra.mxu0 %v208
    %314 = vmatprep.subr.mxu0 0.0
    %315 = vmatpush1.msra.mxu0 %v209
    %316 = vmatprep.subr.mxu0 0.0
    %317 = vmatpush1.msra.mxu0 %v210
    %318 = vmatprep.subr.mxu0 0.0
    %319 = vmatpush1.msra.mxu0 %v211
    %320 = vmatprep.subr.mxu0 0.0
    %321 = vmatpush1.msra.mxu0 %v212
    %322 = vmatprep.subr.mxu0 0.0
    %323 = vmatpush1.msra.mxu0 %v213
    %324 = vmatprep.subr.mxu0 0.0
    %325 = vmatpush1.msra.mxu0 %v214
    %326 = vmatprep.subr.mxu0 0.0
    %327 = vmatpush1.msra.mxu0 %v215
    %328 = vmatprep.subr.mxu0 0.0
    %329 = vmatpush1.msra.mxu0 %v216
    %330 = vmatprep.subr.mxu0 0.0
    %331 = vmatpush1.msra.mxu0 %v217
    %332 = vmatprep.subr.mxu0 0.0
    %333 = vmatpush1.msra.mxu0 %v218
    %334 = vmatprep.subr.mxu0 0.0
    %335 = vmatpush1.msra.mxu0 %v219
    %336 = vmatprep.subr.mxu0 0.0
    %337 = vmatpush1.msra.mxu0 %v220
    %338 = vmatprep.subr.mxu0 0.0
    %339 = vmatpush1.msra.mxu0 %v221
    %340 = vmatprep.subr.mxu0 0.0
    %341 = vmatpush1.msra.mxu0 %v222
    %342 = vmatprep.subr.mxu0 0.0
    %343 = vmatpush1.msra.mxu0 %v223
    %344 = vmatprep.subr.mxu0 0.0
    %345 = vmatpush1.msra.mxu0 %v224
    %346 = vmatprep.subr.mxu0 0.0
    %347 = vmatpush1.msra.mxu0 %v225
    %348 = vmatprep.subr.mxu0 0.0
    %349 = vmatpush1.msra.mxu0 %v226
    %350 = vmatprep.subr.mxu0 0.0
    %351 = vmatpush1.msra.mxu0 %v227
    %352 = vmatprep.subr.mxu0 0.0
    %353 = vmatpush1.msra.mxu0 %v228
    %354 = vmatprep.subr.mxu0 0.0
    %355 = vmatpush1.msra.mxu0 %v229
    %356 = vmatprep.subr.mxu0 0.0
    %357 = vmatpush1.msra.mxu0 %v230
    %358 = vmatprep.subr.mxu0 0.0
    %359 = vmatpush1.msra.mxu0 %v231
    %360 = vmatprep.subr.mxu0 0.0
    %361 = vmatpush1.msra.mxu0 %v232
    %362 = vmatprep.mubr.f32.mxu0 %v199
    %363 = vmatmul.mubr.f32.gmra.mrb[0].mxu0 %v198
    %v364 = vpop.f32.mrb[0].mxu0
    %v365 = vadd.f32 0.0, %v364
    %v366 = vpop.f32.mrb[0].mxu0
    %367 = vdwg.mxu0
    %368 = vmatprep.subr.mxu0 0.0
    %369 = vmatpush1.msra.mxu0 %v233
    %370 = vmatprep.subr.mxu0 0.0
    %371 = vmatpush1.msra.mxu0 %v234
    %372 = vmatprep.subr.mxu0 0.0
    %373 = vmatpush1.msra.mxu0 %v235
    %374 = vmatprep.subr.mxu0 0.0
    %375 = vmatpush1.msra.mxu0 %v236
    %376 = vmatprep.subr.mxu0 0.0
    %377 = vmatpush1.msra.mxu0 %v237
    %378 = vmatprep.subr.mxu0 0.0
    %379 = vmatpush1.msra.mxu0 %v238
    %380 = vmatprep.subr.mxu0 0.0
    %381 = vmatpush1.msra.mxu0 %v239
    %382 = vmatprep.subr.mxu0 0.0
    %383 = vmatpush1.msra.mxu0 %v240
    %384 = vmatprep.subr.mxu0 0.0
    %385 = vmatpush1.msra.mxu0 %v241
    %386 = vmatprep.subr.mxu0 0.0
    %387 = vmatpush1.msra.mxu0 %v242
    %388 = vmatprep.subr.mxu0 0.0
    %389 = vmatpush1.msra.mxu0 %v243
    %390 = vmatprep.subr.mxu0 0.0
    %391 = vmatpush1.msra.mxu0 %v244
    %392 = vmatprep.subr.mxu0 0.0
    %393 = vmatpush1.msra.mxu0 %v245
    %394 = vmatprep.subr.mxu0 0.0
    %395 = vmatpush1.msra.mxu0 %v246
    %396 = vmatprep.subr.mxu0 0.0
    %397 = vmatpush1.msra.mxu0 %v247
    %398 = vmatprep.subr.mxu0 0.0
    %399 = vmatpush1.msra.mxu0 %v248
    %400 = vmatprep.subr.mxu0 0.0
    %401 = vmatpush1.msra.mxu0 0.0
    %402 = vmatprep.subr.mxu0 0.0
    %403 = vmatpush1.msra.mxu0 0.0
    %404 = vmatprep.subr.mxu0 0.0
    %405 = vmatpush1.msra.mxu0 0.0
    %406 = vmatprep.subr.mxu0 0.0
    %407 = vmatpush1.msra.mxu0 0.0
    %408 = vmatprep.subr.mxu0 0.0
    %409 = vmatpush1.msra.mxu0 0.0
    %410 = vmatprep.subr.mxu0 0.0
    %411 = vmatpush1.msra.mxu0 0.0
    %412 = vmatprep.subr.mxu0 0.0
    %413 = vmatpush1.msra.mxu0 0.0
    %414 = vmatprep.subr.mxu0 0.0
    %415 = vmatpush1.msra.mxu0 0.0
    %416 = vmatprep.subr.mxu0 0.0
    %417 = vmatpush1.msra.mxu0 0.0
    %418 = vmatprep.subr.mxu0 0.0
    %419 = vmatpush1.msra.mxu0 0.0
    %420 = vmatprep.subr.mxu0 0.0
    %421 = vmatpush1.msra.mxu0 0.0
    %422 = vmatprep.subr.mxu0 0.0
    %423 = vmatpush1.msra.mxu0 0.0
    %424 = vmatprep.subr.mxu0 0.0
    %425 = vmatpush1.msra.mxu0 0.0
    %426 = vmatprep.subr.mxu0 0.0
    %427 = vmatpush1.msra.mxu0 0.0
    %428 = vmatprep.subr.mxu0 0.0
    %429 = vmatpush1.msra.mxu0 0.0
    %430 = vmatprep.subr.mxu0 0.0
    %431 = vmatpush1.msra.mxu0 0.0
    %432 = vmatprep.mubr.f32.mxu0 0.0
    %433 = vmatmul.mubr.f32.gmra.mrb[0].mxu0 %v200
    %v434 = vpop.f32.mrb[0].mxu0
    %v435 = vadd.f32 %v365, %v434
    %v436 = vpop.f32.mrb[0].mxu0
    %437 = vdwg.mxu0
    %438 = vst [vmem:[%s2] sm:$0xff] %v435
    %v439 = vlaneseq
    %v440 = vshrl.u32 %v439, 7
    %v441 = vsub.s32 0, %v440
    %v442 = vrot.slane %v297, %v441
    %443 = vmatprep.subr.mxu0 0.0
    %444 = vmatpush1.msra.mxu0 %v249
    %445 = vmatprep.subr.mxu0 0.0
    %446 = vmatpush1.msra.mxu0 %v250
    %447 = vmatprep.subr.mxu0 0.0
    %448 = vmatpush1.msra.mxu0 %v251
    %449 = vmatprep.subr.mxu0 0.0
    %450 = vmatpush1.msra.mxu0 %v252
    %451 = vmatprep.subr.mxu0 0.0
    %452 = vmatpush1.msra.mxu0 %v253
    %453 = vmatprep.subr.mxu0 0.0
    %454 = vmatpush1.msra.mxu0 %v254
    %455 = vmatprep.subr.mxu0 0.0
    %456 = vmatpush1.msra.mxu0 %v255
    %457 = vmatprep.subr.mxu0 0.0
    %458 = vmatpush1.msra.mxu0 %v256
    %459 = vmatprep.subr.mxu0 0.0
    %460 = vmatpush1.msra.mxu0 %v257
    %461 = vmatprep.subr.mxu0 0.0
    %462 = vmatpush1.msra.mxu0 %v258
    %463 = vmatprep.subr.mxu0 0.0
    %464 = vmatpush1.msra.mxu0 %v259
    %465 = vmatprep.subr.mxu0 0.0
    %466 = vmatpush1.msra.mxu0 %v260
    %467 = vmatprep.subr.mxu0 0.0
    %468 = vmatpush1.msra.mxu0 %v261
    %469 = vmatprep.subr.mxu0 0.0
    %470 = vmatpush1.msra.mxu0 %v262
    %471 = vmatprep.subr.mxu0 0.0
    %472 = vmatpush1.msra.mxu0 %v263
    %473 = vmatprep.subr.mxu0 0.0
    %474 = vmatpush1.msra.mxu0 %v264
    %475 = vmatprep.subr.mxu0 0.0
    %476 = vmatpush1.msra.mxu0 %v265
    %477 = vmatprep.subr.mxu0 0.0
    %478 = vmatpush1.msra.mxu0 %v266
    %479 = vmatprep.subr.mxu0 0.0
    %480 = vmatpush1.msra.mxu0 %v267
    %481 = vmatprep.subr.mxu0 0.0
    %482 = vmatpush1.msra.mxu0 %v268
    %483 = vmatprep.subr.mxu0 0.0
    %484 = vmatpush1.msra.mxu0 %v269
    %485 = vmatprep.subr.mxu0 0.0
    %486 = vmatpush1.msra.mxu0 %v270
    %487 = vmatprep.subr.mxu0 0.0
    %488 = vmatpush1.msra.mxu0 %v271
    %489 = vmatprep.subr.mxu0 0.0
    %490 = vmatpush1.msra.mxu0 %v272
    %491 = vmatprep.subr.mxu0 0.0
    %492 = vmatpush1.msra.mxu0 %v273
    %493 = vmatprep.subr.mxu0 0.0
    %494 = vmatpush1.msra.mxu0 %v274
    %495 = vmatprep.subr.mxu0 0.0
    %496 = vmatpush1.msra.mxu0 %v275
    %497 = vmatprep.subr.mxu0 0.0
    %498 = vmatpush1.msra.mxu0 %v276
    %499 = vmatprep.subr.mxu0 0.0
    %500 = vmatpush1.msra.mxu0 %v277
    %501 = vmatprep.subr.mxu0 0.0
    %502 = vmatpush1.msra.mxu0 %v278
    %503 = vmatprep.subr.mxu0 0.0
    %504 = vmatpush1.msra.mxu0 %v279
    %505 = vmatprep.subr.mxu0 0.0
    %506 = vmatpush1.msra.mxu0 %v280
    %507 = vmatprep.mubr.f32.mxu0 %v199
    %508 = vmatmul.mubr.f32.gmra.mrb[0].mxu0 %v198
    %v509 = vpop.f32.mrb[0].mxu0
    %v510 = vadd.f32 %v442, %v509
    %v511 = vpop.f32.mrb[0].mxu0
    %512 = vdwg.mxu0
    %513 = vmatprep.subr.mxu0 0.0
    %514 = vmatpush1.msra.mxu0 %v281
    %515 = vmatprep.subr.mxu0 0.0
    %516 = vmatpush1.msra.mxu0 %v282
    %517 = vmatprep.subr.mxu0 0.0
    %518 = vmatpush1.msra.mxu0 %v283
    %519 = vmatprep.subr.mxu0 0.0
    %520 = vmatpush1.msra.mxu0 %v284
    %521 = vmatprep.subr.mxu0 0.0
    %522 = vmatpush1.msra.mxu0 %v285
    %523 = vmatprep.subr.mxu0 0.0
    %524 = vmatpush1.msra.mxu0 %v286
    %525 = vmatprep.subr.mxu0 0.0
    %526 = vmatpush1.msra.mxu0 %v287
    %527 = vmatprep.subr.mxu0 0.0
    %528 = vmatpush1.msra.mxu0 %v288
    %529 = vmatprep.subr.mxu0 0.0
    %530 = vmatpush1.msra.mxu0 %v289
    %531 = vmatprep.subr.mxu0 0.0
    %532 = vmatpush1.msra.mxu0 %v290
    %533 = vmatprep.subr.mxu0 0.0
    %534 = vmatpush1.msra.mxu0 %v291
    %535 = vmatprep.subr.mxu0 0.0
    %536 = vmatpush1.msra.mxu0 %v292
    %537 = vmatprep.subr.mxu0 0.0
    %538 = vmatpush1.msra.mxu0 %v293
    %539 = vmatprep.subr.mxu0 0.0
    %540 = vmatpush1.msra.mxu0 %v294
    %541 = vmatprep.subr.mxu0 0.0
    %542 = vmatpush1.msra.mxu0 %v295
    %543 = vmatprep.subr.mxu0 0.0
    %544 = vmatpush1.msra.mxu0 %v296
    %545 = vmatprep.subr.mxu0 0.0
    %546 = vmatpush1.msra.mxu0 0.0
    %547 = vmatprep.subr.mxu0 0.0
    %548 = vmatpush1.msra.mxu0 0.0
    %549 = vmatprep.subr.mxu0 0.0
    %550 = vmatpush1.msra.mxu0 0.0
    %551 = vmatprep.subr.mxu0 0.0
    %552 = vmatpush1.msra.mxu0 0.0
    %553 = vmatprep.subr.mxu0 0.0
    %554 = vmatpush1.msra.mxu0 0.0
    %555 = vmatprep.subr.mxu0 0.0
    %556 = vmatpush1.msra.mxu0 0.0
    %557 = vmatprep.subr.mxu0 0.0
    %558 = vmatpush1.msra.mxu0 0.0
    %559 = vmatprep.subr.mxu0 0.0
    %560 = vmatpush1.msra.mxu0 0.0
    %561 = vmatprep.subr.mxu0 0.0
    %562 = vmatpush1.msra.mxu0 0.0
    %563 = vmatprep.subr.mxu0 0.0
    %564 = vmatpush1.msra.mxu0 0.0
    %565 = vmatprep.subr.mxu0 0.0
    %566 = vmatpush1.msra.mxu0 0.0
    %567 = vmatprep.subr.mxu0 0.0
    %568 = vmatpush1.msra.mxu0 0.0
    %569 = vmatprep.subr.mxu0 0.0
    %570 = vmatpush1.msra.mxu0 0.0
    %571 = vmatprep.subr.mxu0 0.0
    %572 = vmatpush1.msra.mxu0 0.0
    %573 = vmatprep.subr.mxu0 0.0
    %574 = vmatpush1.msra.mxu0 0.0
    %575 = vmatprep.subr.mxu0 0.0
    %576 = vmatpush1.msra.mxu0 0.0
    %577 = vmatprep.mubr.f32.mxu0 0.0
    %578 = vmatmul.mubr.f32.gmra.mrb[0].mxu0 %v200
    %v579 = vpop.f32.mrb[0].mxu0
    %v580 = vadd.f32 %v510, %v579
    %v581 = vpop.f32.mrb[0].mxu0
    %582 = vdwg.mxu0
    %v583 = vtanh.pop %v580
    %584 = vst [vmem:[%s3] sm:$0xff] %v583
    // Predicated region
    $region14: #{_lambda_.1} parent=1 // pred_check
      _
    $region15: #{_lambda_.1} parent=1 // pred_check_branch
      %586 = sbr.rel (0) target = $region17
    $region16: #{_lambda_.1} parent=1 // pred_region
      _
    $region17: #{_lambda_.1} parent=1 // pred_fallthru
      _
    // Predicated region
    $region18: #{_lambda_.1} parent=1 // pred_check
      _
    $region19: #{_lambda_.1} parent=1 // pred_check_branch
      %588 = sbr.rel (0) target = $region21
    $region20: #{_lambda_.1} parent=1 // pred_region
      _
    $region21: #{_lambda_.1} parent=1 // pred_fallthru
      _
    // Predicated region
    $region22: #{_lambda_.1} parent=1 // pred_check
      _
    $region23: #{_lambda_.1} parent=1 // pred_check_branch
      %590 = sbr.rel (0) target = $region25
    $region24: #{_lambda_.1} parent=1 // pred_region
      _
    $region25: #{_lambda_.1} parent=1 // pred_fallthru
      _
    // Predicated region
    $region26: #{_lambda_.1} parent=1 // pred_check
      _
    $region27: #{_lambda_.1} parent=1 // pred_check_branch
      %592 = sbr.rel (0) target = $region29
    $region28: #{_lambda_.1} parent=1 // pred_region
      _
    $region29: #{_lambda_.1} parent=1 // pred_fallthru
      _
    %593 = vsyncpa [#allocation3], 1

</llo_original>
